<compile_context>
chip_gen: v6e
topology: v6e:2x2x1
jax: 0.10.0
libtpu: 0.0.40
codegen_flags: <defaults>
</compile_context>

<pallas_src>
import functools

import jax
import jax.numpy as jnp
import numpy as np
from jax.experimental import pallas as pl
from jax.experimental.pallas import tpu as pltpu

# ---------------- problem sizes (small, consistent with the module) -------------
N, CIN, H, W = 2, 4, 16, 16
C1, C2, C3 = 8, 8, 8           # per-model output channels
CT = C1 + C2 + C3              # concatenated channels (24)
HW = H * W                     # 256 (lane dim)
HW2 = (H // 2) * (W // 2)      # 64  (model2 coarse spatial)
HW3 = (H // 4) * (W // 4)      # 16  (model3 coarse spatial)


# -------- exact PyTorch bilinear (align_corners=False) interpolation matrix -----
def _bilinear_matrix(out_size: int, in_size: int) -> np.ndarray:
    """U with shape (out_size, in_size): out = U @ in (matches torch upsample_bilinear2d,
    align_corners=False, per spatial axis)."""
    scale = in_size / out_size
    U = np.zeros((out_size, in_size), dtype=np.float64)
    for i in range(out_size):
        src = (i + 0.5) * scale - 0.5
        src = max(src, 0.0)                       # PyTorch clamps negative source coords
        i0 = int(np.floor(src))
        lam = src - i0
        i0 = min(i0, in_size - 1)
        i1 = min(i0 + 1, in_size - 1)
        U[i, i0] += (1.0 - lam)
        U[i, i1] += lam
    return U


def _upsample_operator_T(stride: int) -> np.ndarray:
    """K^T with shape (in_hw, H*W) such that for a coarse feature map F (C, in_hw),
    F @ K^T == bilinear_upsample(F) flattened to (C, H*W).  Only the non-zero content of
    the old dense fused operator (rows = coarse positions)."""
    in_h, in_w = H // stride, W // stride
    Uh = _bilinear_matrix(H, in_h)
    Uw = _bilinear_matrix(W, in_w)
    K = np.kron(Uh, Uw)                                  # (H*W, in_h*in_w)
    return np.ascontiguousarray(K.T.astype(np.float32))  # (in_hw, H*W)


# --------------------------------- Pallas kernel --------------------------------
def ensemble_kernel(x1_ref, x2_ref, x3_ref, w_ref, b_ref, k2_ref, k3_ref, out_ref, *, n):
    w = w_ref[...]                                 # (CT, CIN) f32, model-major rows
    b = b_ref[...]                                 # (CT, 1)   f32
    # bf16 -> f32 upcast is exact (coefficients are dyadic rationals).
    k2 = k2_ref[...].astype(jnp.float32)           # (HW2, HW) = (64, 256)
    k3 = k3_ref[...].astype(jnp.float32)           # (HW3, HW) = (16, 256)

    for bi in range(n):
        # model1: full-resolution 1x1 conv + bias (VPU broadcast-add).
        f1 = jnp.dot(w[0:C1, :], x1_ref[bi],
                     preferred_element_type=jnp.float32) + b[0:C1, :]
        # model2 / model3: strided 1x1 conv + bias at coarse resolution ...
        f2c = jnp.dot(w[C1:C1 + C2, :], x2_ref[bi],
                      preferred_element_type=jnp.float32) + b[C1:C1 + C2, :]
        f3c = jnp.dot(w[C1 + C2:CT, :], x3_ref[bi],
                      preferred_element_type=jnp.float32) + b[C1 + C2:CT, :]
        # ... then exact bilinear (align_corners=False) upsample via the sparse operator.
        f2 = jnp.dot(f2c, k2, preferred_element_type=jnp.float32)   # (C2, 256)
        f3 = jnp.dot(f3c, k3, preferred_element_type=jnp.float32)   # (C3, 256)

        # torch.cat(dim=1) layout; every write is an 8-row-aligned, 256-lane block
        # -> unmasked vector stores.
        out_ref[bi * CT:bi * CT + C1, :] = f1
        out_ref[bi * CT + C1:bi * CT + C1 + C2, :] = f2
        out_ref[bi * CT + C1 + C2:(bi + 1) * CT, :] = f3


@jax.jit
def feature_ensemble_forward(x_nchw, wcat, bcat, k2t, k3t):
    n = x_nchw.shape[0]

    # Full-resolution and coarse (stride-2 / stride-4) inputs, batch-leading so the
    # kernel sees lane-dense, statically indexed (CIN, spatial) tiles per batch.
    x1 = x_nchw.reshape(n, CIN, HW)
    x2 = x_nchw[:, :, ::2, ::2].reshape(n, CIN, HW2)
    x3 = x_nchw[:, :, ::4, ::4].reshape(n, CIN, HW3)

    flops = 2 * n * (C1 * CIN * HW + C2 * CIN * HW2 + C3 * CIN * HW3
                     + C2 * HW2 * HW + C3 * HW3 * HW)
    bytes_accessed = ((x1.size + x2.size + x3.size + wcat.size + bcat.size) * 4
                      + (k2t.size + k3t.size) * 2
                      + n * CT * HW * 4)

    vmem = pl.BlockSpec(memory_space=pltpu.MemorySpace.VMEM)
    out_flat = pl.pallas_call(
        functools.partial(ensemble_kernel, n=n),
        out_shape=jax.ShapeDtypeStruct((n * CT, HW), jnp.float32),
        in_specs=[vmem] * 7,                 # whole arrays resident in VMEM, no grid
        out_specs=vmem,
        cost_estimate=pl.CostEstimate(flops=flops, transcendentals=0,
                                      bytes_accessed=bytes_accessed),
    )(x1, x2, x3, wcat, bcat, k2t, k3t)

    return out_flat.reshape(n, CT, H, W)


# ------------------------- numpy (float64) reference -----------------------------
def reference_forward_np(x, w1, b1, w2, b2, w3, b3):
    x = np.asarray(x, np.float64)
    w1, b1 = np.asarray(w1, np.float64), np.asarray(b1, np.float64)
    w2, b2 = np.asarray(w2, np.float64), np.asarray(b2, np.float64)
    w3, b3 = np.asarray(w3, np.float64), np.asarray(b3, np.float64)

    def conv1x1(xs, w, b):
        return np.einsum("oc,nchw->nohw", w, xs) + b.reshape(1, -1, 1, 1)

    def up_bilinear(f, out_h, out_w):
        in_h, in_w = f.shape[2], f.shape[3]
        Uh = _bilinear_matrix(out_h, in_h)
        Uw = _bilinear_matrix(out_w, in_w)
        return np.einsum("hy,ncyx,wx->nchw", Uh, f, Uw)

    f1 = conv1x1(x, w1, b1)
    f2 = up_bilinear(conv1x1(x[:, :, ::2, ::2], w2, b2), H, W)
    f3 = up_bilinear(conv1x1(x[:, :, ::4, ::4], w3, b3), H, W)
    return np.concatenate([f1, f2, f3], axis=1)


if __name__ == "__main__":
    key = jax.random.PRNGKey(0)
    kx, kw1, kw2, kw3, kb1, kb2, kb3 = jax.random.split(key, 7)

    x = jax.random.normal(kx, (N, CIN, H, W), dtype=jnp.float32)

    # deterministic synthetic weights for the three 1x1-conv "models"
    w1 = jax.random.normal(kw1, (C1, CIN), dtype=jnp.float32) * 0.1
    w2 = jax.random.normal(kw2, (C2, CIN), dtype=jnp.float32) * 0.1
    w3 = jax.random.normal(kw3, (C3, CIN), dtype=jnp.float32) * 0.1
    b1 = jax.random.normal(kb1, (C1, 1), dtype=jnp.float32) * 0.01
    b2 = jax.random.normal(kb2, (C2, 1), dtype=jnp.float32) * 0.01
    b3 = jax.random.normal(kb3, (C3, 1), dtype=jnp.float32) * 0.01

    # --- init-time (hoisted out of the forward path) constant packing ------------
    wcat = jnp.concatenate([w1, w2, w3], axis=0)       # (CT, CIN)
    bcat = jnp.concatenate([b1, b2, b3], axis=0)       # (CT, 1)

    k2_f32 = _upsample_operator_T(2)                   # (64, 256)
    k3_f32 = _upsample_operator_T(4)                   # (16, 256)
    k2t = jnp.asarray(k2_f32, dtype=jnp.bfloat16)
    k3t = jnp.asarray(k3_f32, dtype=jnp.bfloat16)
    # Bilinear coefficients are small dyadic rationals -> bf16 encoding is lossless.
    assert np.array_equal(np.asarray(k2t.astype(jnp.float32)), k2_f32)
    assert np.array_equal(np.asarray(k3t.astype(jnp.float32)), k3_f32)

    out = feature_ensemble_forward(x, wcat, bcat, k2t, k3t)
    out = jax.block_until_ready(out)

    ref = reference_forward_np(np.asarray(x), w1, b1, w2, b2, w3, b3)
    assert out.shape == (N, CT, H, W)
    np.testing.assert_allclose(np.asarray(out), ref, rtol=1e-4, atol=1e-5)

    print("KERNEL_OK")
</pallas_src>

<mosaic_0001>
module attributes {stable_mosaic.version = 11 : i64} {
  func.func @ensemble_kernel(%arg0: memref<2x4x256xf32, #tpu.memory_space<vmem>>, %arg1: memref<2x4x64xf32, #tpu.memory_space<vmem>>, %arg2: memref<2x4x16xf32, #tpu.memory_space<vmem>>, %arg3: memref<24x4xf32, #tpu.memory_space<vmem>>, %arg4: memref<24x1xf32, #tpu.memory_space<vmem>>, %arg5: memref<64x256xbf16, #tpu.memory_space<vmem>>, %arg6: memref<16x256xbf16, #tpu.memory_space<vmem>>, %arg7: memref<48x256xf32, #tpu.memory_space<vmem>>) attributes {dimension_semantics = [], scalar_prefetch = 0 : i64, scratch_operands = 0 : i64, tpu.core_type = #tpu.core_type<tc>} {
    %c0 = arith.constant 0 : index
    %c0_0 = arith.constant 0 : index
    %0 = vector.load %arg3[%c0, %c0_0] : memref<24x4xf32, #tpu.memory_space<vmem>>, vector<24x4xf32>
    %c0_1 = arith.constant 0 : index
    %c0_2 = arith.constant 0 : index
    %1 = vector.load %arg4[%c0_1, %c0_2] : memref<24x1xf32, #tpu.memory_space<vmem>>, vector<24x1xf32>
    %c0_3 = arith.constant 0 : index
    %c0_4 = arith.constant 0 : index
    %2 = vector.load %arg5[%c0_3, %c0_4] : memref<64x256xbf16, #tpu.memory_space<vmem>>, vector<64x256xbf16>
    %3 = arith.extf %2 : vector<64x256xbf16> to vector<64x256xf32>
    %c0_5 = arith.constant 0 : index
    %c0_6 = arith.constant 0 : index
    %4 = vector.load %arg6[%c0_5, %c0_6] : memref<16x256xbf16, #tpu.memory_space<vmem>>, vector<16x256xbf16>
    %5 = arith.extf %4 : vector<16x256xbf16> to vector<16x256xf32>
    %6 = vector.extract_strided_slice %0 {offsets = [0, 0], sizes = [8, 4], strides = [1, 1]} : vector<24x4xf32> to vector<8x4xf32>
    %c0_7 = arith.constant 0 : index
    %c0_8 = arith.constant 0 : index
    %c0_9 = arith.constant 0 : index
    %7 = vector.load %arg0[%c0_7, %c0_8, %c0_9] : memref<2x4x256xf32, #tpu.memory_space<vmem>>, vector<1x4x256xf32>
    %8 = vector.shape_cast %7 : vector<1x4x256xf32> to vector<4x256xf32>
    %cst = arith.constant dense<0.000000e+00> : vector<8x256xf32>
    %9 = tpu.matmul %6, %8, %cst {dimension_numbers = #tpu.dot_dimension_numbers<[1], [0], [0], [1], [0, 0, 1, 1], [], []>} : vector<8x4xf32>, vector<4x256xf32>, vector<8x256xf32> -> vector<8x256xf32>
    %10 = vector.extract_strided_slice %1 {offsets = [0, 0], sizes = [8, 1], strides = [1, 1]} : vector<24x1xf32> to vector<8x1xf32>
    %11 = vector.broadcast %10 : vector<8x1xf32> to vector<8x256xf32>
    %12 = arith.addf %9, %11 : vector<8x256xf32>
    %13 = vector.extract_strided_slice %0 {offsets = [8, 0], sizes = [8, 4], strides = [1, 1]} : vector<24x4xf32> to vector<8x4xf32>
    %c0_10 = arith.constant 0 : index
    %c0_11 = arith.constant 0 : index
    %c0_12 = arith.constant 0 : index
    %14 = vector.load %arg1[%c0_10, %c0_11, %c0_12] : memref<2x4x64xf32, #tpu.memory_space<vmem>>, vector<1x4x64xf32>
    %15 = vector.shape_cast %14 : vector<1x4x64xf32> to vector<4x64xf32>
    %cst_13 = arith.constant dense<0.000000e+00> : vector<8x64xf32>
    %16 = tpu.matmul %13, %15, %cst_13 {dimension_numbers = #tpu.dot_dimension_numbers<[1], [0], [0], [1], [0, 0, 1, 1], [], []>} : vector<8x4xf32>, vector<4x64xf32>, vector<8x64xf32> -> vector<8x64xf32>
    %17 = vector.extract_strided_slice %1 {offsets = [8, 0], sizes = [8, 1], strides = [1, 1]} : vector<24x1xf32> to vector<8x1xf32>
    %18 = vector.broadcast %17 : vector<8x1xf32> to vector<8x64xf32>
    %19 = arith.addf %16, %18 : vector<8x64xf32>
    %20 = vector.extract_strided_slice %0 {offsets = [16, 0], sizes = [8, 4], strides = [1, 1]} : vector<24x4xf32> to vector<8x4xf32>
    %c0_14 = arith.constant 0 : index
    %c0_15 = arith.constant 0 : index
    %c0_16 = arith.constant 0 : index
    %21 = vector.load %arg2[%c0_14, %c0_15, %c0_16] : memref<2x4x16xf32, #tpu.memory_space<vmem>>, vector<1x4x16xf32>
    %22 = vector.shape_cast %21 : vector<1x4x16xf32> to vector<4x16xf32>
    %cst_17 = arith.constant dense<0.000000e+00> : vector<8x16xf32>
    %23 = tpu.matmul %20, %22, %cst_17 {dimension_numbers = #tpu.dot_dimension_numbers<[1], [0], [0], [1], [0, 0, 1, 1], [], []>} : vector<8x4xf32>, vector<4x16xf32>, vector<8x16xf32> -> vector<8x16xf32>
    %24 = vector.extract_strided_slice %1 {offsets = [16, 0], sizes = [8, 1], strides = [1, 1]} : vector<24x1xf32> to vector<8x1xf32>
    %25 = vector.broadcast %24 : vector<8x1xf32> to vector<8x16xf32>
    %26 = arith.addf %23, %25 : vector<8x16xf32>
    %cst_18 = arith.constant dense<0.000000e+00> : vector<8x256xf32>
    %27 = tpu.matmul %19, %3, %cst_18 {dimension_numbers = #tpu.dot_dimension_numbers<[1], [0], [0], [1], [0, 0, 1, 1], [], []>} : vector<8x64xf32>, vector<64x256xf32>, vector<8x256xf32> -> vector<8x256xf32>
    %cst_19 = arith.constant dense<0.000000e+00> : vector<8x256xf32>
    %28 = tpu.matmul %26, %5, %cst_19 {dimension_numbers = #tpu.dot_dimension_numbers<[1], [0], [0], [1], [0, 0, 1, 1], [], []>} : vector<8x16xf32>, vector<16x256xf32>, vector<8x256xf32> -> vector<8x256xf32>
    %c0_20 = arith.constant 0 : index
    %c0_21 = arith.constant 0 : index
    %29 = vector.load %arg7[%c0_20, %c0_21] : memref<48x256xf32, #tpu.memory_space<vmem>>, vector<8x256xf32>
    tpu.vector_store %arg7[%c0_20, %c0_21], %12 {strides = array<i32>} : memref<48x256xf32, #tpu.memory_space<vmem>>, vector<8x256xf32>,
    %c8 = arith.constant 8 : index
    %c0_22 = arith.constant 0 : index
    %30 = vector.load %arg7[%c8, %c0_22] : memref<48x256xf32, #tpu.memory_space<vmem>>, vector<8x256xf32>
    tpu.vector_store %arg7[%c8, %c0_22], %27 {strides = array<i32>} : memref<48x256xf32, #tpu.memory_space<vmem>>, vector<8x256xf32>,
    %c16 = arith.constant 16 : index
    %c0_23 = arith.constant 0 : index
    %31 = vector.load %arg7[%c16, %c0_23] : memref<48x256xf32, #tpu.memory_space<vmem>>, vector<8x256xf32>
    tpu.vector_store %arg7[%c16, %c0_23], %28 {strides = array<i32>} : memref<48x256xf32, #tpu.memory_space<vmem>>, vector<8x256xf32>,
    %32 = vector.extract_strided_slice %0 {offsets = [0, 0], sizes = [8, 4], strides = [1, 1]} : vector<24x4xf32> to vector<8x4xf32>
    %c1 = arith.constant 1 : index
    %c0_24 = arith.constant 0 : index
    %c0_25 = arith.constant 0 : index
    %33 = vector.load %arg0[%c1, %c0_24, %c0_25] : memref<2x4x256xf32, #tpu.memory_space<vmem>>, vector<1x4x256xf32>
    %34 = vector.shape_cast %33 : vector<1x4x256xf32> to vector<4x256xf32>
    %cst_26 = arith.constant dense<0.000000e+00> : vector<8x256xf32>
    %35 = tpu.matmul %32, %34, %cst_26 {dimension_numbers = #tpu.dot_dimension_numbers<[1], [0], [0], [1], [0, 0, 1, 1], [], []>} : vector<8x4xf32>, vector<4x256xf32>, vector<8x256xf32> -> vector<8x256xf32>
    %36 = vector.extract_strided_slice %1 {offsets = [0, 0], sizes = [8, 1], strides = [1, 1]} : vector<24x1xf32> to vector<8x1xf32>
    %37 = vector.broadcast %36 : vector<8x1xf32> to vector<8x256xf32>
    %38 = arith.addf %35, %37 : vector<8x256xf32>
    %39 = vector.extract_strided_slice %0 {offsets = [8, 0], sizes = [8, 4], strides = [1, 1]} : vector<24x4xf32> to vector<8x4xf32>
    %c1_27 = arith.constant 1 : index
    %c0_28 = arith.constant 0 : index
    %c0_29 = arith.constant 0 : index
    %40 = vector.load %arg1[%c1_27, %c0_28, %c0_29] : memref<2x4x64xf32, #tpu.memory_space<vmem>>, vector<1x4x64xf32>
    %41 = vector.shape_cast %40 : vector<1x4x64xf32> to vector<4x64xf32>
    %cst_30 = arith.constant dense<0.000000e+00> : vector<8x64xf32>
    %42 = tpu.matmul %39, %41, %cst_30 {dimension_numbers = #tpu.dot_dimension_numbers<[1], [0], [0], [1], [0, 0, 1, 1], [], []>} : vector<8x4xf32>, vector<4x64xf32>, vector<8x64xf32> -> vector<8x64xf32>
    %43 = vector.extract_strided_slice %1 {offsets = [8, 0], sizes = [8, 1], strides = [1, 1]} : vector<24x1xf32> to vector<8x1xf32>
    %44 = vector.broadcast %43 : vector<8x1xf32> to vector<8x64xf32>
    %45 = arith.addf %42, %44 : vector<8x64xf32>
    %46 = vector.extract_strided_slice %0 {offsets = [16, 0], sizes = [8, 4], strides = [1, 1]} : vector<24x4xf32> to vector<8x4xf32>
    %c1_31 = arith.constant 1 : index
    %c0_32 = arith.constant 0 : index
    %c0_33 = arith.constant 0 : index
    %47 = vector.load %arg2[%c1_31, %c0_32, %c0_33] : memref<2x4x16xf32, #tpu.memory_space<vmem>>, vector<1x4x16xf32>
    %48 = vector.shape_cast %47 : vector<1x4x16xf32> to vector<4x16xf32>
    %cst_34 = arith.constant dense<0.000000e+00> : vector<8x16xf32>
    %49 = tpu.matmul %46, %48, %cst_34 {dimension_numbers = #tpu.dot_dimension_numbers<[1], [0], [0], [1], [0, 0, 1, 1], [], []>} : vector<8x4xf32>, vector<4x16xf32>, vector<8x16xf32> -> vector<8x16xf32>
    %50 = vector.extract_strided_slice %1 {offsets = [16, 0], sizes = [8, 1], strides = [1, 1]} : vector<24x1xf32> to vector<8x1xf32>
    %51 = vector.broadcast %50 : vector<8x1xf32> to vector<8x16xf32>
    %52 = arith.addf %49, %51 : vector<8x16xf32>
    %cst_35 = arith.constant dense<0.000000e+00> : vector<8x256xf32>
    %53 = tpu.matmul %45, %3, %cst_35 {dimension_numbers = #tpu.dot_dimension_numbers<[1], [0], [0], [1], [0, 0, 1, 1], [], []>} : vector<8x64xf32>, vector<64x256xf32>, vector<8x256xf32> -> vector<8x256xf32>
    %cst_36 = arith.constant dense<0.000000e+00> : vector<8x256xf32>
    %54 = tpu.matmul %52, %5, %cst_36 {dimension_numbers = #tpu.dot_dimension_numbers<[1], [0], [0], [1], [0, 0, 1, 1], [], []>} : vector<8x16xf32>, vector<16x256xf32>, vector<8x256xf32> -> vector<8x256xf32>
    %c24 = arith.constant 24 : index
    %c0_37 = arith.constant 0 : index
    %55 = vector.load %arg7[%c24, %c0_37] : memref<48x256xf32, #tpu.memory_space<vmem>>, vector<8x256xf32>
    tpu.vector_store %arg7[%c24, %c0_37], %38 {strides = array<i32>} : memref<48x256xf32, #tpu.memory_space<vmem>>, vector<8x256xf32>,
    %c32 = arith.constant 32 : index
    %c0_38 = arith.constant 0 : index
    %56 = vector.load %arg7[%c32, %c0_38] : memref<48x256xf32, #tpu.memory_space<vmem>>, vector<8x256xf32>
    tpu.vector_store %arg7[%c32, %c0_38], %53 {strides = array<i32>} : memref<48x256xf32, #tpu.memory_space<vmem>>, vector<8x256xf32>,
    %c40 = arith.constant 40 : index
    %c0_39 = arith.constant 0 : index
    %57 = vector.load %arg7[%c40, %c0_39] : memref<48x256xf32, #tpu.memory_space<vmem>>, vector<8x256xf32>
    tpu.vector_store %arg7[%c40, %c0_39], %54 {strides = array<i32>} : memref<48x256xf32, #tpu.memory_space<vmem>>, vector<8x256xf32>,
    return
  }
}

</mosaic_0001>

<llo_original>
// kernel: feature_ensemble_forward.1
$region0: #{feature_ensemble_forward.1}
  #allocation0 [shape = 'u32[]', space=smem, size = 0x4, offset = 0x4, fixed_abs, tag = 'smem constant byte address 0x4 - core index']
  #allocation1 [shape = 'u32[144,128]{1,0:T(1,128)}', space=vmem, size = 0x12000, scoped, tag = 'internal scratch']
  %s0 = inlined_call_operand.vmem [shape: f32[2,4,256], index: 0, kind: input, shape index: {}]
  %s1 = inlined_call_operand.vmem [shape: f32[2,4,64], index: 1, kind: input, shape index: {}]
  %s2 = inlined_call_operand.vmem [shape: f32[2,4,16], index: 2, kind: input, shape index: {}]
  %s3 = inlined_call_operand.vmem [shape: f32[24,4], index: 3, kind: input, shape index: {}]
  %s4 = inlined_call_operand.vmem [shape: f32[24,1], index: 4, kind: input, shape index: {}]
  %s5 = inlined_call_operand.vmem [shape: bf16[64,256], index: 5, kind: input, shape index: {}]
  %s6 = inlined_call_operand.vmem [shape: bf16[16,256], index: 6, kind: input, shape index: {}]
  %s7 = inlined_call_operand.vmem [shape: f32[48,256], index: 7, kind: output, shape index: {}]
  %s8 = sld [smem:[#allocation0]]
  $region38: #{feature_ensemble_forward.1} parent=0
    _
  %s10 = ssub.s32 1, %s8
  %s11 = scalar_select 0, %s10, %s8
  // Predicated region
  $region2: #{feature_ensemble_forward.1} parent=0 // pred_check
    _
  $region3: #{feature_ensemble_forward.1} parent=0 // pred_check_branch
    %13 = sbr.rel (0) target = $region5
  $region4: #{feature_ensemble_forward.1} parent=0 // pred_region
    _
  $region5: #{feature_ensemble_forward.1} parent=0 // pred_fallthru
    _
  // Predicated region
  $region6: #{feature_ensemble_forward.1} parent=0 // pred_check
    _
  $region7: #{feature_ensemble_forward.1} parent=0 // pred_check_branch
    %15 = sbr.rel (0) target = $region9
  $region8: #{feature_ensemble_forward.1} parent=0 // pred_region
    _
  $region9: #{feature_ensemble_forward.1} parent=0 // pred_fallthru
    _
  // Predicated region
  $region10: #{feature_ensemble_forward.1} parent=0 // pred_check
    _
  $region11: #{feature_ensemble_forward.1} parent=0 // pred_check_branch
    %17 = sbr.rel (0) target = $region13
  $region12: #{feature_ensemble_forward.1} parent=0 // pred_region
    _
  $region13: #{feature_ensemble_forward.1} parent=0 // pred_fallthru
    _
  // Predicated region
  $region14: #{feature_ensemble_forward.1} parent=0 // pred_check
    _
  $region15: #{feature_ensemble_forward.1} parent=0 // pred_check_branch
    %19 = sbr.rel (0) target = $region17
  $region16: #{feature_ensemble_forward.1} parent=0 // pred_region
    _
  $region17: #{feature_ensemble_forward.1} parent=0 // pred_fallthru
    _
  // Predicated region
  $region18: #{feature_ensemble_forward.1} parent=0 // pred_check
    _
  $region19: #{feature_ensemble_forward.1} parent=0 // pred_check_branch
    %21 = sbr.rel (0) target = $region21
  $region20: #{feature_ensemble_forward.1} parent=0 // pred_region
    _
  $region21: #{feature_ensemble_forward.1} parent=0 // pred_fallthru
    _
  // Predicated region
  $region22: #{feature_ensemble_forward.1} parent=0 // pred_check
    _
  $region23: #{feature_ensemble_forward.1} parent=0 // pred_check_branch
    %23 = sbr.rel (0) target = $region25
  $region24: #{feature_ensemble_forward.1} parent=0 // pred_region
    _
  $region25: #{feature_ensemble_forward.1} parent=0 // pred_fallthru
    _
  // Predicated region
  $region26: #{feature_ensemble_forward.1} parent=0 // pred_check
    _
  $region27: #{feature_ensemble_forward.1} parent=0 // pred_check_branch
    %25 = sbr.rel (0) target = $region29
  $region28: #{feature_ensemble_forward.1} parent=0 // pred_region
    _
  $region29: #{feature_ensemble_forward.1} parent=0 // pred_fallthru
    _
  %v26 = vld [vmem:[%s3] sm:$0xff]
  %v27 = vld [vmem:[%s3 + $0x8] sm:$0xff]
  %v28 = vld [vmem:[%s3 + $0x10] sm:$0xff]
  %v29 = vld [vmem:[%s4] sm:$0xff]
  %v30 = vld [vmem:[%s4 + $0x8] sm:$0xff]
  %v31 = vld [vmem:[%s4 + $0x10] sm:$0xff]
  %v32 = vld [vmem:[%s5] sm:$0xff]
  %v33 = vld [vmem:[%s5 + $0x8] sm:$0xff]
  %v34 = vld [vmem:[%s5 + $0x10] sm:$0xff]
  %v35 = vld [vmem:[%s5 + $0x18] sm:$0xff]
  %v36 = vld [vmem:[%s5 + $0x20] sm:$0xff]
  %v37 = vld [vmem:[%s5 + $0x28] sm:$0xff]
  %v38 = vld [vmem:[%s5 + $0x30] sm:$0xff]
  %v39 = vld [vmem:[%s5 + $0x38] sm:$0xff]
  %v40 = vunpack.c.l.bf16 %v32
  %v41 = vunpack.c.h.bf16 %v32
  %v42 = vunpack.c.l.bf16 %v33
  %v43 = vunpack.c.h.bf16 %v33
  %v44 = vunpack.c.l.bf16 %v34
  %v45 = vunpack.c.h.bf16 %v34
  %v46 = vunpack.c.l.bf16 %v35
  %v47 = vunpack.c.h.bf16 %v35
  %v48 = vunpack.c.l.bf16 %v36
  %v49 = vunpack.c.h.bf16 %v36
  %v50 = vunpack.c.l.bf16 %v37
  %v51 = vunpack.c.h.bf16 %v37
  %v52 = vunpack.c.l.bf16 %v38
  %v53 = vunpack.c.h.bf16 %v38
  %v54 = vunpack.c.l.bf16 %v39
  %v55 = vunpack.c.h.bf16 %v39
  %v56 = vld [vmem:[%s6] sm:$0xff]
  %v57 = vld [vmem:[%s6 + $0x8] sm:$0xff]
  %v58 = vunpack.c.l.bf16 %v56
  %v59 = vunpack.c.h.bf16 %v56
  %v60 = vunpack.c.l.bf16 %v57
  %v61 = vunpack.c.h.bf16 %v57
  %v62 = vld [vmem:[%s0] sm:$0xff]
  %64 = vset.pattern.permute.xlu0 0
  %65 = vperm.xlu0 %64, %v29
  %v66 = vpop.permute.xlu0 %65
  %v69 = vcombine.high %v62, %v62
  %vm70 = vcmask 31744
  %v72 = vsel %vm70, %v26, 0
  %vm74 = vcmask 1043456
  %v75 = vsel %vm74, %v62, 0
  %v77 = vsel %vm74, %v69, 0
  %79 = vmatprep.subr.mxu0 0.0
  %80 = vmatpush1.msra.mxu0 0.0
  %81 = vmatprep.subr.mxu0 0.0
  %82 = vmatpush1.msra.mxu0 0.0
  %83 = vmatprep.subr.mxu0 0.0
  %84 = vmatpush1.msra.mxu0 0.0
  %85 = vmatprep.subr.mxu0 0.0
  %86 = vmatpush1.msra.mxu0 0.0
  %87 = vmatprep.subr.mxu0 0.0
  %88 = vmatpush1.msra.mxu0 0.0
  %89 = vmatprep.subr.mxu0 0.0
  %90 = vmatpush1.msra.mxu0 0.0
  %91 = vmatprep.subr.mxu0 0.0
  %92 = vmatpush1.msra.mxu0 0.0
  %93 = vmatprep.subr.mxu0 0.0
  %94 = vmatpush1.msra.mxu0 0.0
  %95 = vmatprep.subr.mxu0 0.0
  %96 = vmatpush1.msra.mxu0 0.0
  %97 = vmatprep.subr.mxu0 0.0
  %98 = vmatpush1.msra.mxu0 0.0
  %99 = vmatprep.subr.mxu0 0.0
  %100 = vmatpush1.msra.mxu0 0.0
  %101 = vmatprep.subr.mxu0 0.0
  %102 = vmatpush1.msra.mxu0 0.0
  %103 = vmatprep.subr.mxu0 0.0
  %104 = vmatpush1.msra.mxu0 0.0
  %105 = vmatprep.subr.mxu0 0.0
  %106 = vmatpush1.msra.mxu0 0.0
  %107 = vmatprep.subr.mxu0 0.0
  %108 = vmatpush1.msra.mxu0 0.0
  %109 = vmatprep.subr.mxu0 %v77
  %110 = vmatpush1.msra.mxu0 %v75
  %111 = vmatprep.subr.mxu0 0.0
  %112 = vmatpush2.msra.mxu0 0.0
  %113 = vmatprep.subr.mxu0 0.0
  %114 = vmatpush2.msra.mxu0 0.0
  %115 = vmatprep.subr.mxu0 0.0
  %116 = vmatpush2.msra.mxu0 0.0
  %117 = vmatprep.subr.mxu0 0.0
  %118 = vmatpush2.msra.mxu0 0.0
  %119 = vmatprep.subr.mxu0 0.0
  %120 = vmatpush2.msra.mxu0 0.0
  %121 = vmatprep.subr.mxu0 0.0
  %122 = vmatpush2.msra.mxu0 0.0
  %123 = vmatprep.subr.mxu0 0.0
  %124 = vmatpush2.msra.mxu0 0.0
  %125 = vmatprep.subr.mxu0 0.0
  %126 = vmatpush2.msra.mxu0 0.0
  %127 = vmatprep.subr.mxu0 0.0
  %128 = vmatpush2.msra.mxu0 0.0
  %129 = vmatprep.subr.mxu0 0.0
  %130 = vmatpush2.msra.mxu0 0.0
  %131 = vmatprep.subr.mxu0 0.0
  %132 = vmatpush2.msra.mxu0 0.0
  %133 = vmatprep.subr.mxu0 0.0
  %134 = vmatpush2.msra.mxu0 0.0
  %135 = vmatprep.subr.mxu0 0.0
  %136 = vmatpush2.msra.mxu0 0.0
  %137 = vmatprep.subr.mxu0 0.0
  %138 = vmatpush2.msra.mxu0 0.0
  %139 = vmatprep.subr.mxu0 0.0
  %140 = vmatpush2.msra.mxu0 0.0
  %141 = vmatprep.subr.mxu0 0.0
  %142 = vmatpush2.msra.mxu0 0.0
  %143 = vmatprep.mubr.f32.mxu0 0.0
  %144 = vmatmul.mubr.f32.gmra.mxu0 %v72
  %v145 = vpop.f32.mrf.mxu0
  %v146 = vadd.f32 %v66, %v145
  %v147 = vpop.f32.mrf.mxu0
  %v148 = vadd.f32 %v66, %v147
  %149 = vdwg.mxu0
  %v150 = vld [vmem:[%s1] sm:$0xf]
  %152 = vset.pattern.permute.xlu0 0
  %153 = vperm.xlu0 %152, %v30
  %v154 = vpop.permute.xlu0 %153
  %v157 = vsel %vm70, %v27, 0
  %v160 = vsel %vm74, %v150, 0
  %162 = vmatprep.subr.mxu0 0.0
  %163 = vmatpush1.msra.mxu0 0.0
  %164 = vmatprep.subr.mxu0 0.0
  %165 = vmatpush1.msra.mxu0 0.0
  %166 = vmatprep.subr.mxu0 0.0
  %167 = vmatpush1.msra.mxu0 0.0
  %168 = vmatprep.subr.mxu0 0.0
  %169 = vmatpush1.msra.mxu0 0.0
  %170 = vmatprep.subr.mxu0 0.0
  %171 = vmatpush1.msra.mxu0 0.0
  %172 = vmatprep.subr.mxu0 0.0
  %173 = vmatpush1.msra.mxu0 0.0
  %174 = vmatprep.subr.mxu0 0.0
  %175 = vmatpush1.msra.mxu0 0.0
  %176 = vmatprep.subr.mxu0 0.0
  %177 = vmatpush1.msra.mxu0 0.0
  %178 = vmatprep.subr.mxu0 0.0
  %179 = vmatpush1.msra.mxu0 0.0
  %180 = vmatprep.subr.mxu0 0.0
  %181 = vmatpush1.msra.mxu0 0.0
  %182 = vmatprep.subr.mxu0 0.0
  %183 = vmatpush1.msra.mxu0 0.0
  %184 = vmatprep.subr.mxu0 0.0
  %185 = vmatpush1.msra.mxu0 0.0
  %186 = vmatprep.subr.mxu0 0.0
  %187 = vmatpush1.msra.mxu0 0.0
  %188 = vmatprep.subr.mxu0 0.0
  %189 = vmatpush1.msra.mxu0 0.0
  %190 = vmatprep.subr.mxu0 0.0
  %191 = vmatpush1.msra.mxu0 0.0
  %192 = vmatprep.subr.mxu0 0.0
  %193 = vmatpush1.msra.mxu0 %v160
  %194 = vmatprep.subr.mxu0 0.0
  %195 = vmatpush2.msra.mxu0 0.0
  %196 = vmatprep.subr.mxu0 0.0
  %197 = vmatpush2.msra.mxu0 0.0
  %198 = vmatprep.subr.mxu0 0.0
  %199 = vmatpush2.msra.mxu0 0.0
  %200 = vmatprep.subr.mxu0 0.0
  %201 = vmatpush2.msra.mxu0 0.0
  %202 = vmatprep.subr.mxu0 0.0
  %203 = vmatpush2.msra.mxu0 0.0
  %204 = vmatprep.subr.mxu0 0.0
  %205 = vmatpush2.msra.mxu0 0.0
  %206 = vmatprep.subr.mxu0 0.0
  %207 = vmatpush2.msra.mxu0 0.0
  %208 = vmatprep.subr.mxu0 0.0
  %209 = vmatpush2.msra.mxu0 0.0
  %210 = vmatprep.subr.mxu0 0.0
  %211 = vmatpush2.msra.mxu0 0.0
  %212 = vmatprep.subr.mxu0 0.0
  %213 = vmatpush2.msra.mxu0 0.0
  %214 = vmatprep.subr.mxu0 0.0
  %215 = vmatpush2.msra.mxu0 0.0
  %216 = vmatprep.subr.mxu0 0.0
  %217 = vmatpush2.msra.mxu0 0.0
  %218 = vmatprep.subr.mxu0 0.0
  %219 = vmatpush2.msra.mxu0 0.0
  %220 = vmatprep.subr.mxu0 0.0
  %221 = vmatpush2.msra.mxu0 0.0
  %222 = vmatprep.subr.mxu0 0.0
  %223 = vmatpush2.msra.mxu0 0.0
  %224 = vmatprep.subr.mxu0 0.0
  %225 = vmatpush2.msra.mxu0 0.0
  %226 = vmatprep.mubr.f32.mxu0 0.0
  %227 = vmatmul.mubr.f32.gmra.mxu0 %v157
  %v228 = vpop.f32.mrf.mxu0
  %v229 = vadd.f32 %v154, %v228
  %v230 = vpop.f32.mrf.mxu0
  %231 = vdwg.mxu0
  %v232 = vld [vmem:[%s2] sm:$0xf]
  %234 = vset.pattern.permute.xlu0 0
  %235 = vperm.xlu0 %234, %v31
  %v236 = vpop.permute.xlu0 %235
  %v239 = vsel %vm70, %v28, 0
  %v242 = vsel %vm74, %v232, 0
  %244 = vmatprep.subr.mxu0 0.0
  %245 = vmatpush1.msra.mxu0 0.0
  %246 = vmatprep.subr.mxu0 0.0
  %247 = vmatpush1.msra.mxu0 0.0
  %248 = vmatprep.subr.mxu0 0.0
  %249 = vmatpush1.msra.mxu0 0.0
  %250 = vmatprep.subr.mxu0 0.0
  %251 = vmatpush1.msra.mxu0 0.0
  %252 = vmatprep.subr.mxu0 0.0
  %253 = vmatpush1.msra.mxu0 0.0
  %254 = vmatprep.subr.mxu0 0.0
  %255 = vmatpush1.msra.mxu0 0.0
  %256 = vmatprep.subr.mxu0 0.0
  %257 = vmatpush1.msra.mxu0 0.0
  %258 = vmatprep.subr.mxu0 0.0
  %259 = vmatpush1.msra.mxu0 0.0
  %260 = vmatprep.subr.mxu0 0.0
  %261 = vmatpush1.msra.mxu0 0.0
  %262 = vmatprep.subr.mxu0 0.0
  %263 = vmatpush1.msra.mxu0 0.0
  %264 = vmatprep.subr.mxu0 0.0
  %265 = vmatpush1.msra.mxu0 0.0
  %266 = vmatprep.subr.mxu0 0.0
  %267 = vmatpush1.msra.mxu0 0.0
  %268 = vmatprep.subr.mxu0 0.0
  %269 = vmatpush1.msra.mxu0 0.0
  %270 = vmatprep.subr.mxu0 0.0
  %271 = vmatpush1.msra.mxu0 0.0
  %272 = vmatprep.subr.mxu0 0.0
  %273 = vmatpush1.msra.mxu0 0.0
  %274 = vmatprep.subr.mxu0 0.0
  %275 = vmatpush1.msra.mxu0 %v242
  %276 = vmatprep.subr.mxu0 0.0
  %277 = vmatpush2.msra.mxu0 0.0
  %278 = vmatprep.subr.mxu0 0.0
  %279 = vmatpush2.msra.mxu0 0.0
  %280 = vmatprep.subr.mxu0 0.0
  %281 = vmatpush2.msra.mxu0 0.0
  %282 = vmatprep.subr.mxu0 0.0
  %283 = vmatpush2.msra.mxu0 0.0
  %284 = vmatprep.subr.mxu0 0.0
  %285 = vmatpush2.msra.mxu0 0.0
  %286 = vmatprep.subr.mxu0 0.0
  %287 = vmatpush2.msra.mxu0 0.0
  %288 = vmatprep.subr.mxu0 0.0
  %289 = vmatpush2.msra.mxu0 0.0
  %290 = vmatprep.subr.mxu0 0.0
  %291 = vmatpush2.msra.mxu0 0.0
  %292 = vmatprep.subr.mxu0 0.0
  %293 = vmatpush2.msra.mxu0 0.0
  %294 = vmatprep.subr.mxu0 0.0
  %295 = vmatpush2.msra.mxu0 0.0
  %296 = vmatprep.subr.mxu0 0.0
  %297 = vmatpush2.msra.mxu0 0.0
  %298 = vmatprep.subr.mxu0 0.0
  %299 = vmatpush2.msra.mxu0 0.0
  %300 = vmatprep.subr.mxu0 0.0
  %301 = vmatpush2.msra.mxu0 0.0
  %302 = vmatprep.subr.mxu0 0.0
  %303 = vmatpush2.msra.mxu0 0.0
  %304 = vmatprep.subr.mxu0 0.0
  %305 = vmatpush2.msra.mxu0 0.0
  %306 = vmatprep.subr.mxu0 0.0
  %307 = vmatpush2.msra.mxu0 0.0
  %308 = vmatprep.mubr.f32.mxu0 0.0
  %309 = vmatmul.mubr.f32.gmra.mxu0 %v239
  %v310 = vpop.f32.mrf.mxu0
  %v311 = vadd.f32 %v236, %v310
  %v312 = vpop.f32.mrf.mxu0
  %313 = vdwg.mxu0
  %vm314 = vcmask 523264
  %v316 = vsel %vm314, %v229, 0
  %318 = vmatprep.subr.mxu0 0.0
  %319 = vmatpush1.msra.mxu0 0.0
  %320 = vmatprep.subr.mxu0 0.0
  %321 = vmatpush1.msra.mxu0 0.0
  %322 = vmatprep.subr.mxu0 0.0
  %323 = vmatpush1.msra.mxu0 0.0
  %324 = vmatprep.subr.mxu0 0.0
  %325 = vmatpush1.msra.mxu0 0.0
  %326 = vmatprep.subr.mxu0 0.0
  %327 = vmatpush1.msra.mxu0 0.0
  %328 = vmatprep.subr.mxu0 0.0
  %329 = vmatpush1.msra.mxu0 0.0
  %330 = vmatprep.subr.mxu0 0.0
  %331 = vmatpush1.msra.mxu0 0.0
  %332 = vmatprep.subr.mxu0 0.0
  %333 = vmatpush1.msra.mxu0 0.0
  %334 = vmatprep.subr.mxu0 %v55
  %335 = vmatpush1.msra.mxu0 %v54
  %336 = vmatprep.subr.mxu0 %v53
  %337 = vmatpush1.msra.mxu0 %v52
  %338 = vmatprep.subr.mxu0 %v51
  %339 = vmatpush1.msra.mxu0 %v50
  %340 = vmatprep.subr.mxu0 %v49
  %341 = vmatpush1.msra.mxu0 %v48
  %342 = vmatprep.subr.mxu0 %v47
  %343 = vmatpush1.msra.mxu0 %v46
  %344 = vmatprep.subr.mxu0 %v45
  %345 = vmatpush1.msra.mxu0 %v44
  %346 = vmatprep.subr.mxu0 %v43
  %347 = vmatpush1.msra.mxu0 %v42
  %348 = vmatprep.subr.mxu0 %v41
  %349 = vmatpush1.msra.mxu0 %v40
  %350 = vmatprep.subr.mxu0 0.0
  %351 = vmatpush2.msra.mxu0 0.0
  %352 = vmatprep.subr.mxu0 0.0
  %353 = vmatpush2.msra.mxu0 0.0
  %354 = vmatprep.subr.mxu0 0.0
  %355 = vmatpush2.msra.mxu0 0.0
  %356 = vmatprep.subr.mxu0 0.0
  %357 = vmatpush2.msra.mxu0 0.0
  %358 = vmatprep.subr.mxu0 0.0
  %359 = vmatpush2.msra.mxu0 0.0
  %360 = vmatprep.subr.mxu0 0.0
  %361 = vmatpush2.msra.mxu0 0.0
  %362 = vmatprep.subr.mxu0 0.0
  %363 = vmatpush2.msra.mxu0 0.0
  %364 = vmatprep.subr.mxu0 0.0
  %365 = vmatpush2.msra.mxu0 0.0
  %366 = vmatprep.subr.mxu0 0.0
  %367 = vmatpush2.msra.mxu0 0.0
  %368 = vmatprep.subr.mxu0 0.0
  %369 = vmatpush2.msra.mxu0 0.0
  %370 = vmatprep.subr.mxu0 0.0
  %371 = vmatpush2.msra.mxu0 0.0
  %372 = vmatprep.subr.mxu0 0.0
  %373 = vmatpush2.msra.mxu0 0.0
  %374 = vmatprep.subr.mxu0 0.0
  %375 = vmatpush2.msra.mxu0 0.0
  %376 = vmatprep.subr.mxu0 0.0
  %377 = vmatpush2.msra.mxu0 0.0
  %378 = vmatprep.subr.mxu0 0.0
  %379 = vmatpush2.msra.mxu0 0.0
  %380 = vmatprep.subr.mxu0 0.0
  %381 = vmatpush2.msra.mxu0 0.0
  %382 = vmatprep.mubr.f32.mxu0 0.0
  %383 = vmatmul.mubr.f32.gmra.mxu0 %v316
  %v384 = vpop.f32.mrf.mxu0
  %v385 = vadd.f32 0.0, %v384
  %v386 = vpop.f32.mrf.mxu0
  %v387 = vadd.f32 0.0, %v386
  %388 = vdwg.mxu0
  %vm389 = vcmask 130048
  %v391 = vsel %vm389, %v311, 0
  %393 = vmatprep.subr.mxu0 0.0
  %394 = vmatpush1.msra.mxu0 0.0
  %395 = vmatprep.subr.mxu0 0.0
  %396 = vmatpush1.msra.mxu0 0.0
  %397 = vmatprep.subr.mxu0 0.0
  %398 = vmatpush1.msra.mxu0 0.0
  %399 = vmatprep.subr.mxu0 0.0
  %400 = vmatpush1.msra.mxu0 0.0
  %401 = vmatprep.subr.mxu0 0.0
  %402 = vmatpush1.msra.mxu0 0.0
  %403 = vmatprep.subr.mxu0 0.0
  %404 = vmatpush1.msra.mxu0 0.0
  %405 = vmatprep.subr.mxu0 0.0
  %406 = vmatpush1.msra.mxu0 0.0
  %407 = vmatprep.subr.mxu0 0.0
  %408 = vmatpush1.msra.mxu0 0.0
  %409 = vmatprep.subr.mxu0 0.0
  %410 = vmatpush1.msra.mxu0 0.0
  %411 = vmatprep.subr.mxu0 0.0
  %412 = vmatpush1.msra.mxu0 0.0
  %413 = vmatprep.subr.mxu0 0.0
  %414 = vmatpush1.msra.mxu0 0.0
  %415 = vmatprep.subr.mxu0 0.0
  %416 = vmatpush1.msra.mxu0 0.0
  %417 = vmatprep.subr.mxu0 0.0
  %418 = vmatpush1.msra.mxu0 0.0
  %419 = vmatprep.subr.mxu0 0.0
  %420 = vmatpush1.msra.mxu0 0.0
  %421 = vmatprep.subr.mxu0 %v61
  %422 = vmatpush1.msra.mxu0 %v60
  %423 = vmatprep.subr.mxu0 %v59
  %424 = vmatpush1.msra.mxu0 %v58
  %425 = vmatprep.subr.mxu0 0.0
  %426 = vmatpush2.msra.mxu0 0.0
  %427 = vmatprep.subr.mxu0 0.0
  %428 = vmatpush2.msra.mxu0 0.0
  %429 = vmatprep.subr.mxu0 0.0
  %430 = vmatpush2.msra.mxu0 0.0
  %431 = vmatprep.subr.mxu0 0.0
  %432 = vmatpush2.msra.mxu0 0.0
  %433 = vmatprep.subr.mxu0 0.0
  %434 = vmatpush2.msra.mxu0 0.0
  %435 = vmatprep.subr.mxu0 0.0
  %436 = vmatpush2.msra.mxu0 0.0
  %437 = vmatprep.subr.mxu0 0.0
  %438 = vmatpush2.msra.mxu0 0.0
  %439 = vmatprep.subr.mxu0 0.0
  %440 = vmatpush2.msra.mxu0 0.0
  %441 = vmatprep.subr.mxu0 0.0
  %442 = vmatpush2.msra.mxu0 0.0
  %443 = vmatprep.subr.mxu0 0.0
  %444 = vmatpush2.msra.mxu0 0.0
  %445 = vmatprep.subr.mxu0 0.0
  %446 = vmatpush2.msra.mxu0 0.0
  %447 = vmatprep.subr.mxu0 0.0
  %448 = vmatpush2.msra.mxu0 0.0
  %449 = vmatprep.subr.mxu0 0.0
  %450 = vmatpush2.msra.mxu0 0.0
  %451 = vmatprep.subr.mxu0 0.0
  %452 = vmatpush2.msra.mxu0 0.0
  %453 = vmatprep.subr.mxu0 0.0
  %454 = vmatpush2.msra.mxu0 0.0
  %455 = vmatprep.subr.mxu0 0.0
  %456 = vmatpush2.msra.mxu0 0.0
  %457 = vmatprep.mubr.f32.mxu0 0.0
  %458 = vmatmul.mubr.f32.gmra.mxu0 %v391
  %v459 = vpop.f32.mrf.mxu0
  %v460 = vadd.f32 0.0, %v459
  %v461 = vpop.f32.mrf.mxu0
  %v462 = vadd.f32 0.0, %v461
  %463 = vdwg.mxu0
  %464 = vst [vmem:[%s7] sm:$0xff] %v146
  %465 = vst [vmem:[%s7 + $0x8] sm:$0xff] %v148
  %466 = vst [vmem:[%s7 + $0x10] sm:$0xff] %v385
  %467 = vst [vmem:[%s7 + $0x18] sm:$0xff] %v387
  %468 = vst [vmem:[%s7 + $0x20] sm:$0xff] %v460
  %469 = vst [vmem:[%s7 + $0x28] sm:$0xff] %v462
  %s470 = scalar_lea.vmem %s0, 8
  %v471 = vld [vmem:[%s470] sm:$0xff]
  %v473 = vcombine.high %v471, %v471
  %v474 = vsel %vm74, %v471, 0
  %v476 = vsel %vm74, %v473, 0
  %478 = vmatprep.subr.mxu0 0.0
  %479 = vmatpush1.msra.mxu0 0.0
  %480 = vmatprep.subr.mxu0 0.0
  %481 = vmatpush1.msra.mxu0 0.0
  %482 = vmatprep.subr.mxu0 0.0
  %483 = vmatpush1.msra.mxu0 0.0
  %484 = vmatprep.subr.mxu0 0.0
  %485 = vmatpush1.msra.mxu0 0.0
  %486 = vmatprep.subr.mxu0 0.0
  %487 = vmatpush1.msra.mxu0 0.0
  %488 = vmatprep.subr.mxu0 0.0
  %489 = vmatpush1.msra.mxu0 0.0
  %490 = vmatprep.subr.mxu0 0.0
  %491 = vmatpush1.msra.mxu0 0.0
  %492 = vmatprep.subr.mxu0 0.0
  %493 = vmatpush1.msra.mxu0 0.0
  %494 = vmatprep.subr.mxu0 0.0
  %495 = vmatpush1.msra.mxu0 0.0
  %496 = vmatprep.subr.mxu0 0.0
  %497 = vmatpush1.msra.mxu0 0.0
  %498 = vmatprep.subr.mxu0 0.0
  %499 = vmatpush1.msra.mxu0 0.0
  %500 = vmatprep.subr.mxu0 0.0
  %501 = vmatpush1.msra.mxu0 0.0
  %502 = vmatprep.subr.mxu0 0.0
  %503 = vmatpush1.msra.mxu0 0.0
  %504 = vmatprep.subr.mxu0 0.0
  %505 = vmatpush1.msra.mxu0 0.0
  %506 = vmatprep.subr.mxu0 0.0
  %507 = vmatpush1.msra.mxu0 0.0
  %508 = vmatprep.subr.mxu0 %v476
  %509 = vmatpush1.msra.mxu0 %v474
  %510 = vmatprep.subr.mxu0 0.0
  %511 = vmatpush2.msra.mxu0 0.0
  %512 = vmatprep.subr.mxu0 0.0
  %513 = vmatpush2.msra.mxu0 0.0
  %514 = vmatprep.subr.mxu0 0.0
  %515 = vmatpush2.msra.mxu0 0.0
  %516 = vmatprep.subr.mxu0 0.0
  %517 = vmatpush2.msra.mxu0 0.0
  %518 = vmatprep.subr.mxu0 0.0
  %519 = vmatpush2.msra.mxu0 0.0
  %520 = vmatprep.subr.mxu0 0.0
  %521 = vmatpush2.msra.mxu0 0.0
  %522 = vmatprep.subr.mxu0 0.0
  %523 = vmatpush2.msra.mxu0 0.0
  %524 = vmatprep.subr.mxu0 0.0
  %525 = vmatpush2.msra.mxu0 0.0
  %526 = vmatprep.subr.mxu0 0.0
  %527 = vmatpush2.msra.mxu0 0.0
  %528 = vmatprep.subr.mxu0 0.0
  %529 = vmatpush2.msra.mxu0 0.0
  %530 = vmatprep.subr.mxu0 0.0
  %531 = vmatpush2.msra.mxu0 0.0
  %532 = vmatprep.subr.mxu0 0.0
  %533 = vmatpush2.msra.mxu0 0.0
  %534 = vmatprep.subr.mxu0 0.0
  %535 = vmatpush2.msra.mxu0 0.0
  %536 = vmatprep.subr.mxu0 0.0
  %537 = vmatpush2.msra.mxu0 0.0
  %538 = vmatprep.subr.mxu0 0.0
  %539 = vmatpush2.msra.mxu0 0.0
  %540 = vmatprep.subr.mxu0 0.0
  %541 = vmatpush2.msra.mxu0 0.0
  %542 = vmatprep.mubr.f32.mxu0 0.0
  %543 = vmatmul.mubr.f32.gmra.mxu0 %v72
  %v544 = vpop.f32.mrf.mxu0
  %v545 = vadd.f32 %v66, %v544
  %v546 = vpop.f32.mrf.mxu0
  %v547 = vadd.f32 %v66, %v546
  %548 = vdwg.mxu0
  %s549 = scalar_lea.vmem %s1, 4
  %v550 = vld [vmem:[%s549] sm:$0xf]
  %v552 = vsel %vm74, %v550, 0
  %554 = vmatprep.subr.mxu0 0.0
  %555 = vmatpush1.msra.mxu0 0.0
  %556 = vmatprep.subr.mxu0 0.0
  %557 = vmatpush1.msra.mxu0 0.0
  %558 = vmatprep.subr.mxu0 0.0
  %559 = vmatpush1.msra.mxu0 0.0
  %560 = vmatprep.subr.mxu0 0.0
  %561 = vmatpush1.msra.mxu0 0.0
  %562 = vmatprep.subr.mxu0 0.0
  %563 = vmatpush1.msra.mxu0 0.0
  %564 = vmatprep.subr.mxu0 0.0
  %565 = vmatpush1.msra.mxu0 0.0
  %566 = vmatprep.subr.mxu0 0.0
  %567 = vmatpush1.msra.mxu0 0.0
  %568 = vmatprep.subr.mxu0 0.0
  %569 = vmatpush1.msra.mxu0 0.0
  %570 = vmatprep.subr.mxu0 0.0
  %571 = vmatpush1.msra.mxu0 0.0
  %572 = vmatprep.subr.mxu0 0.0
  %573 = vmatpush1.msra.mxu0 0.0
  %574 = vmatprep.subr.mxu0 0.0
  %575 = vmatpush1.msra.mxu0 0.0
  %576 = vmatprep.subr.mxu0 0.0
  %577 = vmatpush1.msra.mxu0 0.0
  %578 = vmatprep.subr.mxu0 0.0
  %579 = vmatpush1.msra.mxu0 0.0
  %580 = vmatprep.subr.mxu0 0.0
  %581 = vmatpush1.msra.mxu0 0.0
  %582 = vmatprep.subr.mxu0 0.0
  %583 = vmatpush1.msra.mxu0 0.0
  %584 = vmatprep.subr.mxu0 0.0
  %585 = vmatpush1.msra.mxu0 %v552
  %586 = vmatprep.subr.mxu0 0.0
  %587 = vmatpush2.msra.mxu0 0.0
  %588 = vmatprep.subr.mxu0 0.0
  %589 = vmatpush2.msra.mxu0 0.0
  %590 = vmatprep.subr.mxu0 0.0
  %591 = vmatpush2.msra.mxu0 0.0
  %592 = vmatprep.subr.mxu0 0.0
  %593 = vmatpush2.msra.mxu0 0.0
  %594 = vmatprep.subr.mxu0 0.0
  %595 = vmatpush2.msra.mxu0 0.0
  %596 = vmatprep.subr.mxu0 0.0
  %597 = vmatpush2.msra.mxu0 0.0
  %598 = vmatprep.subr.mxu0 0.0
  %599 = vmatpush2.msra.mxu0 0.0
  %600 = vmatprep.subr.mxu0 0.0
  %601 = vmatpush2.msra.mxu0 0.0
  %602 = vmatprep.subr.mxu0 0.0
  %603 = vmatpush2.msra.mxu0 0.0
  %604 = vmatprep.subr.mxu0 0.0
  %605 = vmatpush2.msra.mxu0 0.0
  %606 = vmatprep.subr.mxu0 0.0
  %607 = vmatpush2.msra.mxu0 0.0
  %608 = vmatprep.subr.mxu0 0.0
  %609 = vmatpush2.msra.mxu0 0.0
  %610 = vmatprep.subr.mxu0 0.0
  %611 = vmatpush2.msra.mxu0 0.0
  %612 = vmatprep.subr.mxu0 0.0
  %613 = vmatpush2.msra.mxu0 0.0
  %614 = vmatprep.subr.mxu0 0.0
  %615 = vmatpush2.msra.mxu0 0.0
  %616 = vmatprep.subr.mxu0 0.0
  %617 = vmatpush2.msra.mxu0 0.0
  %618 = vmatprep.mubr.f32.mxu0 0.0
  %619 = vmatmul.mubr.f32.gmra.mxu0 %v157
  %v620 = vpop.f32.mrf.mxu0
  %v621 = vadd.f32 %v154, %v620
  %v622 = vpop.f32.mrf.mxu0
  %623 = vdwg.mxu0
  %s624 = scalar_lea.vmem %s2, 4
  %v625 = vld [vmem:[%s624] sm:$0xf]
  %v627 = vsel %vm74, %v625, 0
  %629 = vmatprep.subr.mxu0 0.0
  %630 = vmatpush1.msra.mxu0 0.0
  %631 = vmatprep.subr.mxu0 0.0
  %632 = vmatpush1.msra.mxu0 0.0
  %633 = vmatprep.subr.mxu0 0.0
  %634 = vmatpush1.msra.mxu0 0.0
  %635 = vmatprep.subr.mxu0 0.0
  %636 = vmatpush1.msra.mxu0 0.0
  %637 = vmatprep.subr.mxu0 0.0
  %638 = vmatpush1.msra.mxu0 0.0
  %639 = vmatprep.subr.mxu0 0.0
  %640 = vmatpush1.msra.mxu0 0.0
  %641 = vmatprep.subr.mxu0 0.0
  %642 = vmatpush1.msra.mxu0 0.0
  %643 = vmatprep.subr.mxu0 0.0
  %644 = vmatpush1.msra.mxu0 0.0
  %645 = vmatprep.subr.mxu0 0.0
  %646 = vmatpush1.msra.mxu0 0.0
  %647 = vmatprep.subr.mxu0 0.0
  %648 = vmatpush1.msra.mxu0 0.0
  %649 = vmatprep.subr.mxu0 0.0
  %650 = vmatpush1.msra.mxu0 0.0
  %651 = vmatprep.subr.mxu0 0.0
  %652 = vmatpush1.msra.mxu0 0.0
  %653 = vmatprep.subr.mxu0 0.0
  %654 = vmatpush1.msra.mxu0 0.0
  %655 = vmatprep.subr.mxu0 0.0
  %656 = vmatpush1.msra.mxu0 0.0
  %657 = vmatprep.subr.mxu0 0.0
  %658 = vmatpush1.msra.mxu0 0.0
  %659 = vmatprep.subr.mxu0 0.0
  %660 = vmatpush1.msra.mxu0 %v627
  %661 = vmatprep.subr.mxu0 0.0
  %662 = vmatpush2.msra.mxu0 0.0
  %663 = vmatprep.subr.mxu0 0.0
  %664 = vmatpush2.msra.mxu0 0.0
  %665 = vmatprep.subr.mxu0 0.0
  %666 = vmatpush2.msra.mxu0 0.0
  %667 = vmatprep.subr.mxu0 0.0
  %668 = vmatpush2.msra.mxu0 0.0
  %669 = vmatprep.subr.mxu0 0.0
  %670 = vmatpush2.msra.mxu0 0.0
  %671 = vmatprep.subr.mxu0 0.0
  %672 = vmatpush2.msra.mxu0 0.0
  %673 = vmatprep.subr.mxu0 0.0
  %674 = vmatpush2.msra.mxu0 0.0
  %675 = vmatprep.subr.mxu0 0.0
  %676 = vmatpush2.msra.mxu0 0.0
  %677 = vmatprep.subr.mxu0 0.0
  %678 = vmatpush2.msra.mxu0 0.0
  %679 = vmatprep.subr.mxu0 0.0
  %680 = vmatpush2.msra.mxu0 0.0
  %681 = vmatprep.subr.mxu0 0.0
  %682 = vmatpush2.msra.mxu0 0.0
  %683 = vmatprep.subr.mxu0 0.0
  %684 = vmatpush2.msra.mxu0 0.0
  %685 = vmatprep.subr.mxu0 0.0
  %686 = vmatpush2.msra.mxu0 0.0
  %687 = vmatprep.subr.mxu0 0.0
  %688 = vmatpush2.msra.mxu0 0.0
  %689 = vmatprep.subr.mxu0 0.0
  %690 = vmatpush2.msra.mxu0 0.0
  %691 = vmatprep.subr.mxu0 0.0
  %692 = vmatpush2.msra.mxu0 0.0
  %693 = vmatprep.mubr.f32.mxu0 0.0
  %694 = vmatmul.mubr.f32.gmra.mxu0 %v239
  %v695 = vpop.f32.mrf.mxu0
  %v696 = vadd.f32 %v236, %v695
  %v697 = vpop.f32.mrf.mxu0
  %698 = vdwg.mxu0
  %v700 = vsel %vm314, %v621, 0
  %702 = vmatprep.subr.mxu0 0.0
  %703 = vmatpush1.msra.mxu0 0.0
  %704 = vmatprep.subr.mxu0 0.0
  %705 = vmatpush1.msra.mxu0 0.0
  %706 = vmatprep.subr.mxu0 0.0
  %707 = vmatpush1.msra.mxu0 0.0
  %708 = vmatprep.subr.mxu0 0.0
  %709 = vmatpush1.msra.mxu0 0.0
  %710 = vmatprep.subr.mxu0 0.0
  %711 = vmatpush1.msra.mxu0 0.0
  %712 = vmatprep.subr.mxu0 0.0
  %713 = vmatpush1.msra.mxu0 0.0
  %714 = vmatprep.subr.mxu0 0.0
  %715 = vmatpush1.msra.mxu0 0.0
  %716 = vmatprep.subr.mxu0 0.0
  %717 = vmatpush1.msra.mxu0 0.0
  %718 = vmatprep.subr.mxu0 %v55
  %719 = vmatpush1.msra.mxu0 %v54
  %720 = vmatprep.subr.mxu0 %v53
  %721 = vmatpush1.msra.mxu0 %v52
  %722 = vmatprep.subr.mxu0 %v51
  %723 = vmatpush1.msra.mxu0 %v50
  %724 = vmatprep.subr.mxu0 %v49
  %725 = vmatpush1.msra.mxu0 %v48
  %726 = vmatprep.subr.mxu0 %v47
  %727 = vmatpush1.msra.mxu0 %v46
  %728 = vmatprep.subr.mxu0 %v45
  %729 = vmatpush1.msra.mxu0 %v44
  %730 = vmatprep.subr.mxu0 %v43
  %731 = vmatpush1.msra.mxu0 %v42
  %732 = vmatprep.subr.mxu0 %v41
  %733 = vmatpush1.msra.mxu0 %v40
  %734 = vmatprep.subr.mxu0 0.0
  %735 = vmatpush2.msra.mxu0 0.0
  %736 = vmatprep.subr.mxu0 0.0
  %737 = vmatpush2.msra.mxu0 0.0
  %738 = vmatprep.subr.mxu0 0.0
  %739 = vmatpush2.msra.mxu0 0.0
  %740 = vmatprep.subr.mxu0 0.0
  %741 = vmatpush2.msra.mxu0 0.0
  %742 = vmatprep.subr.mxu0 0.0
  %743 = vmatpush2.msra.mxu0 0.0
  %744 = vmatprep.subr.mxu0 0.0
  %745 = vmatpush2.msra.mxu0 0.0
  %746 = vmatprep.subr.mxu0 0.0
  %747 = vmatpush2.msra.mxu0 0.0
  %748 = vmatprep.subr.mxu0 0.0
  %749 = vmatpush2.msra.mxu0 0.0
  %750 = vmatprep.subr.mxu0 0.0
  %751 = vmatpush2.msra.mxu0 0.0
  %752 = vmatprep.subr.mxu0 0.0
  %753 = vmatpush2.msra.mxu0 0.0
  %754 = vmatprep.subr.mxu0 0.0
  %755 = vmatpush2.msra.mxu0 0.0
  %756 = vmatprep.subr.mxu0 0.0
  %757 = vmatpush2.msra.mxu0 0.0
  %758 = vmatprep.subr.mxu0 0.0
  %759 = vmatpush2.msra.mxu0 0.0
  %760 = vmatprep.subr.mxu0 0.0
  %761 = vmatpush2.msra.mxu0 0.0
  %762 = vmatprep.subr.mxu0 0.0
  %763 = vmatpush2.msra.mxu0 0.0
  %764 = vmatprep.subr.mxu0 0.0
  %765 = vmatpush2.msra.mxu0 0.0
  %766 = vmatprep.mubr.f32.mxu0 0.0
  %767 = vmatmul.mubr.f32.gmra.mxu0 %v700
  %v768 = vpop.f32.mrf.mxu0
  %v769 = vadd.f32 0.0, %v768
  %v770 = vpop.f32.mrf.mxu0
  %v771 = vadd.f32 0.0, %v770
  %772 = vdwg.mxu0
  %v774 = vsel %vm389, %v696, 0
  %776 = vmatprep.subr.mxu0 0.0
  %777 = vmatpush1.msra.mxu0 0.0
  %778 = vmatprep.subr.mxu0 0.0
  %779 = vmatpush1.msra.mxu0 0.0
  %780 = vmatprep.subr.mxu0 0.0
  %781 = vmatpush1.msra.mxu0 0.0
  %782 = vmatprep.subr.mxu0 0.0
  %783 = vmatpush1.msra.mxu0 0.0
  %784 = vmatprep.subr.mxu0 0.0
  %785 = vmatpush1.msra.mxu0 0.0
  %786 = vmatprep.subr.mxu0 0.0
  %787 = vmatpush1.msra.mxu0 0.0
  %788 = vmatprep.subr.mxu0 0.0
  %789 = vmatpush1.msra.mxu0 0.0
  %790 = vmatprep.subr.mxu0 0.0
  %791 = vmatpush1.msra.mxu0 0.0
  %792 = vmatprep.subr.mxu0 0.0
  %793 = vmatpush1.msra.mxu0 0.0
  %794 = vmatprep.subr.mxu0 0.0
  %795 = vmatpush1.msra.mxu0 0.0
  %796 = vmatprep.subr.mxu0 0.0
  %797 = vmatpush1.msra.mxu0 0.0
  %798 = vmatprep.subr.mxu0 0.0
  %799 = vmatpush1.msra.mxu0 0.0
  %800 = vmatprep.subr.mxu0 0.0
  %801 = vmatpush1.msra.mxu0 0.0
  %802 = vmatprep.subr.mxu0 0.0
  %803 = vmatpush1.msra.mxu0 0.0
  %804 = vmatprep.subr.mxu0 %v61
  %805 = vmatpush1.msra.mxu0 %v60
  %806 = vmatprep.subr.mxu0 %v59
  %807 = vmatpush1.msra.mxu0 %v58
  %808 = vmatprep.subr.mxu0 0.0
  %809 = vmatpush2.msra.mxu0 0.0
  %810 = vmatprep.subr.mxu0 0.0
  %811 = vmatpush2.msra.mxu0 0.0
  %812 = vmatprep.subr.mxu0 0.0
  %813 = vmatpush2.msra.mxu0 0.0
  %814 = vmatprep.subr.mxu0 0.0
  %815 = vmatpush2.msra.mxu0 0.0
  %816 = vmatprep.subr.mxu0 0.0
  %817 = vmatpush2.msra.mxu0 0.0
  %818 = vmatprep.subr.mxu0 0.0
  %819 = vmatpush2.msra.mxu0 0.0
  %820 = vmatprep.subr.mxu0 0.0
  %821 = vmatpush2.msra.mxu0 0.0
  %822 = vmatprep.subr.mxu0 0.0
  %823 = vmatpush2.msra.mxu0 0.0
  %824 = vmatprep.subr.mxu0 0.0
  %825 = vmatpush2.msra.mxu0 0.0
  %826 = vmatprep.subr.mxu0 0.0
  %827 = vmatpush2.msra.mxu0 0.0
  %828 = vmatprep.subr.mxu0 0.0
  %829 = vmatpush2.msra.mxu0 0.0
  %830 = vmatprep.subr.mxu0 0.0
  %831 = vmatpush2.msra.mxu0 0.0
  %832 = vmatprep.subr.mxu0 0.0
  %833 = vmatpush2.msra.mxu0 0.0
  %834 = vmatprep.subr.mxu0 0.0
  %835 = vmatpush2.msra.mxu0 0.0
  %836 = vmatprep.subr.mxu0 0.0
  %837 = vmatpush2.msra.mxu0 0.0
  %838 = vmatprep.subr.mxu0 0.0
  %839 = vmatpush2.msra.mxu0 0.0
  %840 = vmatprep.mubr.f32.mxu0 0.0
  %841 = vmatmul.mubr.f32.gmra.mxu0 %v774
  %v842 = vpop.f32.mrf.mxu0
  %v843 = vadd.f32 0.0, %v842
  %v844 = vpop.f32.mrf.mxu0
  %v845 = vadd.f32 0.0, %v844
  %846 = vdwg.mxu0
  %847 = vst [vmem:[%s7 + $0x30] sm:$0xff] %v545
  %848 = vst [vmem:[%s7 + $0x38] sm:$0xff] %v547
  %849 = vst [vmem:[%s7 + $0x40] sm:$0xff] %v769
  %850 = vst [vmem:[%s7 + $0x48] sm:$0xff] %v771
  %851 = vst [vmem:[%s7 + $0x50] sm:$0xff] %v843
  %852 = vst [vmem:[%s7 + $0x58] sm:$0xff] %v845
  // Predicated region
  $region30: #{feature_ensemble_forward.1} parent=0 // pred_check
    _
  $region31: #{feature_ensemble_forward.1} parent=0 // pred_check_branch
    %854 = sbr.rel (0) target = $region33
  $region32: #{feature_ensemble_forward.1} parent=0 // pred_region
    _
  $region33: #{feature_ensemble_forward.1} parent=0 // pred_fallthru
    _
  // Predicated region
  $region34: #{feature_ensemble_forward.1} parent=0 // pred_check
    _
  $region35: #{feature_ensemble_forward.1} parent=0 // pred_check_branch
    %856 = sbr.rel (0) target = $region37
  $region36: #{feature_ensemble_forward.1} parent=0 // pred_region
    _
  $region37: #{feature_ensemble_forward.1} parent=0 // pred_fallthru
    _

</llo_original>
